<compile_context>
chip_gen: v7x
topology: tpu7x:2x2x1
jax: 0.10.0
libtpu: 0.0.40
codegen_flags: <defaults>
</compile_context>

<pallas_src>
import jax
import jax.numpy as jnp
from jax.experimental import pallas as pl
from jax.experimental.pallas import tpu as pltpu


# ----------------------------------------------------------------------------
# Pallas kernel: (R, Cin) @ (Cin, thw) + bias  -> (R, thw), f32 accumulate.
# R = 4*Cout enumerates (co, a, b) sub-pixel/channel rows; lanes carry H*W.
# ----------------------------------------------------------------------------
def _upconv_matmul_kernel(x_ref, w_ref, b_ref, o_ref):
    x = x_ref[...].astype(jnp.bfloat16)                       # (Cin, thw)
    acc = jnp.dot(w_ref[...], x,                              # (R, thw) f32
                  preferred_element_type=jnp.float32)
    o_ref[...] = (acc + b_ref[...]).astype(o_ref.dtype)


def _pick_hw_tile(c_in, r_out, hw, n_batch, budget_bytes=20 * 1024 * 1024):
    """Largest lane tile (multiple of 128, <= 2048) whose double-buffered f32
    input+output tiles fit the VMEM budget; falls back to the full spatial
    extent when it is small.  Splits the work when a single tile would leave
    one of v7x's two TensorCores idle."""
    bytes_per_col = 4 * (c_in + r_out)                 # f32 X col + f32 out col
    max_cols = budget_bytes // (2 * bytes_per_col)     # /2: double buffering
    thw = int(min(2048, max(128, (max_cols // 128) * 128)))
    if hw <= thw:
        thw = hw
        if n_batch < 2 and hw >= 256:
            # keep >= 2 parallel grid steps so both v7x TensorCores get work
            thw = 128 * pl.cdiv(pl.cdiv(hw, 2), 128)
    return thw


# ----------------------------------------------------------------------------
# ConvTranspose2d(in_feat, out_feat, kernel_size=2, stride=2), NCHW in/out.
# ----------------------------------------------------------------------------
def conv_transpose2d_k2s2(down_nchw, weight, bias):
    """down_nchw: (N, Cin, H, W); weight: (Cin, Cout, 2, 2); bias: (Cout,).
    Returns (N, Cout, 2H, 2W) float32."""
    N, Cin, H, W = down_nchw.shape
    Cout = weight.shape[1]
    R = 4 * Cout
    HW = H * W

    # NCHW -> (N, Cin, H*W): pure reshape, no transpose / data movement.
    x3 = down_nchw.reshape(N, Cin, HW)

    # (Cin, Cout, 2, 2) -> rows ordered (co, a, b): (4*Cout, Cin), bf16 for MXU.
    w_rows = jnp.transpose(weight, (1, 2, 3, 0)).reshape(R, Cin).astype(jnp.bfloat16)
    # bias repeated per (a, b) sub-pixel, as an f32 column for the epilogue add.
    b_col = jnp.repeat(bias.astype(jnp.float32), 4).reshape(R, 1)

    thw = _pick_hw_tile(Cin, R, HW, N)
    grid = (N, pl.cdiv(HW, thw))

    y = pl.pallas_call(
        _upconv_matmul_kernel,
        out_shape=jax.ShapeDtypeStruct((N, R, HW), jnp.float32),
        grid_spec=pltpu.PrefetchScalarGridSpec(
            num_scalar_prefetch=0,
            grid=grid,
            in_specs=[
                pl.BlockSpec((None, Cin, thw), lambda n, t: (n, 0, t)),  # X tile
                pl.BlockSpec((R, Cin), lambda n, t: (0, 0)),             # weight (resident)
                pl.BlockSpec((R, 1), lambda n, t: (0, 0)),               # bias column
            ],
            out_specs=pl.BlockSpec((None, R, thw), lambda n, t: (n, 0, t)),
        ),
        compiler_params=pltpu.CompilerParams(
            dimension_semantics=("parallel", "parallel"),
            vmem_limit_bytes=32 * 1024 * 1024),
    )(x3, w_rows, b_col)

    # Single remaining layout op: 2x2 sub-pixel interleave, (co,a,b) rows ->
    # (N, Cout, 2H, 2W).  out[n, co, 2i+a, 2j+b] = y[n, co*4 + a*2 + b, i*W + j]
    y = y.reshape(N, Cout, 2, 2, H, W)
    y = jnp.transpose(y, (0, 1, 4, 2, 5, 3)).reshape(N, Cout, 2 * H, 2 * W)
    return y


# ----------------------------------------------------------------------------
# UpCat forward (is_deconv=True branch).
# ----------------------------------------------------------------------------
def upcat_forward(inputs, down_outputs, weight, bias, key):
    """inputs: (N, C_skip, Hs, Ws) NCHW; down_outputs: (N, in_feat, H, W) NCHW."""
    outputs = conv_transpose2d_k2s2(down_outputs, weight, bias)

    # ------ random-padding glue (matches the torch.rand-based alignment) ------
    # Plain JAX: shape plumbing only, not the hot path.  The quirky use of
    # -offset (not -offset1) mirrors the original module exactly.
    k0, k1, k2, k3 = jax.random.split(key, 4)
    offset = inputs.shape[3] - outputs.shape[3]
    if offset == 1:
        add = jax.random.uniform(
            k0, (outputs.shape[0], outputs.shape[1], outputs.shape[2], 1),
            dtype=outputs.dtype)
        outputs = jnp.concatenate([outputs, add], axis=3)
    elif offset > 1:
        add = jax.random.uniform(
            k0, (outputs.shape[0], outputs.shape[1], outputs.shape[2], offset),
            dtype=outputs.dtype)
        outputs = jnp.concatenate([outputs, add], axis=3)
        add = jax.random.uniform(
            k1, (outputs.shape[0], outputs.shape[1], offset, outputs.shape[3]),
            dtype=outputs.dtype)
        outputs = jnp.concatenate([outputs, add], axis=2)
    offset1 = inputs.shape[3] - outputs.shape[3]
    if offset1 < 0:
        add = jax.random.uniform(
            k2, (inputs.shape[0], inputs.shape[1], inputs.shape[2], -offset),
            dtype=inputs.dtype)
        inputs = jnp.concatenate([inputs, add], axis=3)
        add = jax.random.uniform(
            k3, (inputs.shape[0], inputs.shape[1], -offset, inputs.shape[3]),
            dtype=inputs.dtype)
        inputs = jnp.concatenate([inputs, add], axis=2)
    # --------------------------------------------------------------------------

    # TODO(synk): the channel concat (and the sub-pixel interleave above) could
    # be fused into the kernel's output buffer with interleaved stores; kept in
    # XLA here for robustness.
    return jnp.concatenate([inputs, outputs], axis=1)


# ----------------------------------------------------------------------------
# Pure-JAX reference for the transposed conv (correctness check).
# ----------------------------------------------------------------------------
def _ref_conv_transpose(down_nchw, weight, bias):
    # out[n, co, 2i+a, 2j+b] = sum_ci x[n, ci, i, j] * W[ci, co, a, b] + bias[co]
    y = jnp.einsum("ncij,coab->noiajb", down_nchw, weight)
    N, Cout, H, _, W, _ = y.shape
    y = y.reshape(N, Cout, 2 * H, 2 * W)
    return y + bias.reshape(1, Cout, 1, 1)


if __name__ == "__main__":
    # Small shapes consistent with the module:
    #   in_feat = 8, out_feat = 4
    #   down_outputs: (2, 8, 8, 8)  -> upsampled to (2, 4, 16, 16)
    #   inputs (skip): (2, 4, 16, 16)   (offset == 0, no random padding)
    in_feat, out_feat = 8, 4
    N, H, W = 2, 8, 8

    key = jax.random.PRNGKey(0)
    k_in, k_down, k_w, k_b, k_pad = jax.random.split(key, 5)

    inputs = jax.random.normal(k_in, (N, out_feat, 2 * H, 2 * W), dtype=jnp.float32)
    down_outputs = jax.random.normal(k_down, (N, in_feat, H, W), dtype=jnp.float32)

    # ConvTranspose2d params: weight (in_feat, out_feat, 2, 2), bias (out_feat,)
    weight = 0.1 * jax.random.normal(k_w, (in_feat, out_feat, 2, 2), dtype=jnp.float32)
    bias = 0.1 * jax.random.normal(k_b, (out_feat,), dtype=jnp.float32)

    upcat = jax.jit(upcat_forward)
    out = jax.block_until_ready(upcat(inputs, down_outputs, weight, bias, k_pad))

    # Reference computed with the same bf16 rounding the MXU path applies to
    # the activation and the weight (accumulation is f32 in both).
    x_bf = down_outputs.astype(jnp.bfloat16).astype(jnp.float32)
    w_bf = weight.astype(jnp.bfloat16).astype(jnp.float32)
    ref_up = _ref_conv_transpose(x_bf, w_bf, bias)
    ref_out = jnp.concatenate([inputs, ref_up], axis=1)

    assert out.shape == (N, 2 * out_feat, 2 * H, 2 * W), out.shape
    err = float(jnp.max(jnp.abs(out - ref_out)))
    assert jnp.allclose(out, ref_out, atol=1e-4, rtol=1e-4), f"mismatch vs reference (max abs err {err})"

    print("KERNEL_OK")
</pallas_src>

<mosaic_0001>
module attributes {stable_mosaic.version = 11 : i64} {
  func.func @_upconv_matmul_kernel(%arg0: i32, %arg1: i32, %arg2: memref<1x8x64xf32, #tpu.memory_space<vmem>>, %arg3: memref<16x8xbf16, #tpu.memory_space<vmem>>, %arg4: memref<16x1xf32, #tpu.memory_space<vmem>>, %arg5: memref<1x16x64xf32, #tpu.memory_space<vmem>>) attributes {dimension_semantics = [#tpu.dimension_semantics<parallel>, #tpu.dimension_semantics<parallel>], iteration_bounds = array<i64: 2, 1>, scalar_prefetch = 0 : i64, scratch_operands = 0 : i64, tpu.core_type = #tpu.core_type<tc>, window_params = [{transform_indices = @transform_0, window_bounds = array<i64: 1, 8, 64>}, {pipeline_mode = #tpu.pipeline_mode<synchronous>, transform_indices = @transform_1, window_bounds = array<i64: 16, 8>}, {pipeline_mode = #tpu.pipeline_mode<synchronous>, transform_indices = @transform_2, window_bounds = array<i64: 16, 1>}, {transform_indices = @transform_3, window_bounds = array<i64: 1, 16, 64>}]} {
    %c0 = arith.constant 0 : index
    %c0_0 = arith.constant 0 : index
    %c0_1 = arith.constant 0 : index
    %0 = vector.load %arg2[%c0, %c0_0, %c0_1] : memref<1x8x64xf32, #tpu.memory_space<vmem>>, vector<1x8x64xf32>
    %1 = vector.shape_cast %0 : vector<1x8x64xf32> to vector<8x64xf32>
    %2 = arith.truncf %1 : vector<8x64xf32> to vector<8x64xbf16>
    %c0_2 = arith.constant 0 : index
    %c0_3 = arith.constant 0 : index
    %3 = vector.load %arg3[%c0_2, %c0_3] : memref<16x8xbf16, #tpu.memory_space<vmem>>, vector<16x8xbf16>
    %cst = arith.constant dense<0.000000e+00> : vector<16x64xf32>
    %4 = tpu.matmul %3, %2, %cst {dimension_numbers = #tpu.dot_dimension_numbers<[1], [0], [0], [1], [0, 0, 1, 1], [], []>} : vector<16x8xbf16>, vector<8x64xbf16>, vector<16x64xf32> -> vector<16x64xf32>
    %c0_4 = arith.constant 0 : index
    %c0_5 = arith.constant 0 : index
    %5 = vector.load %arg4[%c0_4, %c0_5] : memref<16x1xf32, #tpu.memory_space<vmem>>, vector<16x1xf32>
    %6 = vector.broadcast %5 : vector<16x1xf32> to vector<16x64xf32>
    %7 = arith.addf %4, %6 : vector<16x64xf32>
    %c0_6 = arith.constant 0 : index
    %c0_7 = arith.constant 0 : index
    %c0_8 = arith.constant 0 : index
    %8 = vector.load %arg5[%c0_6, %c0_7, %c0_8] : memref<1x16x64xf32, #tpu.memory_space<vmem>>, vector<1x16x64xf32>
    %9 = vector.shape_cast %8 : vector<1x16x64xf32> to vector<16x64xf32>
    %10 = vector.shape_cast %7 : vector<16x64xf32> to vector<1x16x64xf32>
    tpu.vector_store %arg5[%c0_6, %c0_7, %c0_8], %10 {strides = array<i32>} : memref<1x16x64xf32, #tpu.memory_space<vmem>>, vector<1x16x64xf32>,
    return
  }
  func.func @transform_0(%arg0: i32, %arg1: i32) -> (i32, i32, i32) {
    %c0_i32 = arith.constant 0 : i32
    %c0_i32_0 = arith.constant 0 : i32
    return %arg0, %c0_i32, %arg1 : i32, i32, i32
  }
  func.func @transform_1(%arg0: i32, %arg1: i32) -> (i32, i32) {
    %c0_i32 = arith.constant 0 : i32
    %c0_i32_0 = arith.constant 0 : i32
    %c0_i32_1 = arith.constant 0 : i32
    return %c0_i32, %c0_i32_0 : i32, i32
  }
  func.func @transform_2(%arg0: i32, %arg1: i32) -> (i32, i32) {
    %c0_i32 = arith.constant 0 : i32
    %c0_i32_0 = arith.constant 0 : i32
    %c0_i32_1 = arith.constant 0 : i32
    return %c0_i32, %c0_i32_0 : i32, i32
  }
  func.func @transform_3(%arg0: i32, %arg1: i32) -> (i32, i32, i32) {
    %c0_i32 = arith.constant 0 : i32
    %c0_i32_0 = arith.constant 0 : i32
    return %arg0, %c0_i32, %arg1 : i32, i32, i32
  }
}

</mosaic_0001>

<llo_original>
// kernel: upcat_forward.1
$region0: #{upcat_forward.1}
  #allocation0 [shape = 'u32[]', space=smem, size = 0x4, offset = 0x4, fixed_abs, tag = 'smem constant byte address 0x4 - core index']
  #allocation1 [shape = 'u32[144,128]{1,0:T(1,128)}', space=vmem, size = 0x12000, scoped, tag = 'internal scratch']
  %s0 = inlined_call_operand.vmem [shape: f32[2,8,64], index: 0, kind: input, shape index: {}]
  %s1 = inlined_call_operand.vmem [shape: bf16[16,8], index: 1, kind: input, shape index: {}]
  %s2 = inlined_call_operand.vmem [shape: f32[16,1], index: 2, kind: input, shape index: {}]
  %s3 = inlined_call_operand.vmem [shape: f32[2,16,64], index: 3, kind: output, shape index: {}]
  %s4 = sld [smem:[#allocation0]]
  $region45: #{upcat_forward.1} parent=0
    _
  %s6 = ssub.s32 1, %s4
  %s7 = scalar_select 0, %s6, %s4
  loop: start=0, step=1, limit=4
  $region2: #{upcat_forward.1} parent=0 // loop_pre_header
    _
  $region3: #{upcat_forward.1} parent=0 // loop_header
    %s9 = sphi 0, %s13
    %p10 = scmp.ge.s32.totalorder %s9, 4
    %s16 = sphi 0, %s28
    %s17 = sphi 0, %s24
    %s18 = sphi 0, %s16
    %s19 = sphi 0, %s17
    %s20 = sphi 0, %s18
    %s21 = sphi 0, %s19
    %s33 = sphi 0, %s35
    %s36 = sphi 0, %s33
    %s37 = sphi 0, %s36
    %s53 = sphi 0, %s37
    %s57 = sphi 0, %s57
    %s59 = sphi 0, %s57
    %s60 = sphi 0, %s59
    %s74 = sphi 0, %s60
    %s78 = sphi 0, %s78
    %s80 = sphi 0, %s78
    %s81 = sphi 0, %s80
    %s95 = sphi 0, %s81
    %s103 = sphi 0, %s105
    %s106 = sphi 0, %s103
    %s107 = sphi 0, %s106
    %s123 = sphi 0, %s107
  $region4: #{upcat_forward.1} parent=0 // loop_header_branch
    %12 = sbr.rel (%p10) target = $region8
  $region5: #{upcat_forward.1} parent=0 // loop_body
    %s14 = ssub.s32 %s9, 1
    %s15 = ssub.s32 %s9, 2
    %s22 = sadd.s32 1, %s17
    %p23 = scmp.ge.s32.totalorder %s22, 1
    %s24 = scalar_select %p23, 0, %s22
    %s25 = sadd.s32 1, %s16
    %s26 = scalar_select %p23, %s25, %s16
    %p27 = scmp.ge.s32.totalorder %s26, 2
    %s28 = scalar_select %p27, 0, %s26
    %s29 = ssub.s32 %s16, %s28
    %s30 = ssub.s32 %s17, %s24
    %s31 = sor.u32 %s29, %s30
    %p32 = scmp.eq.s32.totalorder %s31, 0
    %s34 = sadd.s32 %s33, 1
    %s35 = scalar_select %p32, %s33, %s34
    %p38 = pneg %p32
    %p39 = scmp.eq.s32.totalorder %s9, 1
    %p40 = por %p38, %p39
    %p41 = scmp.ne.s32.totalorder %s33, %s36
    %p42 = scmp.eq.s32.totalorder %s9, 0
    %p43 = por %p41, %p42
    %p44 = scmp.ne.s32.totalorder %s33, %s36
    %p45 = scmp.eq.s32.totalorder %s14, 1
    %p46 = por %p44, %p45
    %p47 = scmp.ne.s32.totalorder %s36, %s37
    %p48 = scmp.eq.s32.totalorder %s14, 0
    %p49 = por %p47, %p48
    %p50 = scmp.ne.s32.totalorder %s36, %s37
    %p51 = scmp.eq.s32.totalorder %s15, 1
    %p52 = por %p50, %p51
    %p54 = scmp.ne.s32.totalorder %s37, %s53
    %p55 = scmp.eq.s32.totalorder %s15, 0
    %p56 = por %p54, %p55
    %s58 = sadd.s32 %s57, 1
    %p61 = scmp.eq.s32.totalorder %s9, 1
    %p62 = scmp.ne.s32.totalorder %s57, %s59
    %p63 = scmp.eq.s32.totalorder %s9, 0
    %p64 = por %p62, %p63
    %p65 = scmp.ne.s32.totalorder %s57, %s59
    %p66 = scmp.eq.s32.totalorder %s14, 1
    %p67 = por %p65, %p66
    %p68 = scmp.ne.s32.totalorder %s59, %s60
    %p69 = scmp.eq.s32.totalorder %s14, 0
    %p70 = por %p68, %p69
    %p71 = scmp.ne.s32.totalorder %s59, %s60
    %p72 = scmp.eq.s32.totalorder %s15, 1
    %p73 = por %p71, %p72
    %p75 = scmp.ne.s32.totalorder %s60, %s74
    %p76 = scmp.eq.s32.totalorder %s15, 0
    %p77 = por %p75, %p76
    %s79 = sadd.s32 %s78, 1
    %p82 = scmp.eq.s32.totalorder %s9, 1
    %p83 = scmp.ne.s32.totalorder %s78, %s80
    %p84 = scmp.eq.s32.totalorder %s9, 0
    %p85 = por %p83, %p84
    %p86 = scmp.ne.s32.totalorder %s78, %s80
    %p87 = scmp.eq.s32.totalorder %s14, 1
    %p88 = por %p86, %p87
    %p89 = scmp.ne.s32.totalorder %s80, %s81
    %p90 = scmp.eq.s32.totalorder %s14, 0
    %p91 = por %p89, %p90
    %p92 = scmp.ne.s32.totalorder %s80, %s81
    %p93 = scmp.eq.s32.totalorder %s15, 1
    %p94 = por %p92, %p93
    %p96 = scmp.ne.s32.totalorder %s81, %s95
    %p97 = scmp.eq.s32.totalorder %s15, 0
    %p98 = por %p96, %p97
    %s99 = ssub.s32 %s16, %s28
    %s100 = ssub.s32 %s17, %s24
    %s101 = sor.u32 %s99, %s100
    %p102 = scmp.eq.s32.totalorder %s101, 0
    %s104 = sadd.s32 %s103, 1
    %s105 = scalar_select %p102, %s103, %s104
    %p108 = pneg %p102
    %p109 = scmp.eq.s32.totalorder %s9, 1
    %p110 = por %p108, %p109
    %p111 = scmp.ne.s32.totalorder %s103, %s106
    %p112 = scmp.eq.s32.totalorder %s9, 0
    %p113 = por %p111, %p112
    %p114 = scmp.ne.s32.totalorder %s103, %s106
    %p115 = scmp.eq.s32.totalorder %s14, 1
    %p116 = por %p114, %p115
    %p117 = scmp.ne.s32.totalorder %s106, %s107
    %p118 = scmp.eq.s32.totalorder %s14, 0
    %p119 = por %p117, %p118
    %p120 = scmp.ne.s32.totalorder %s106, %s107
    %p121 = scmp.eq.s32.totalorder %s15, 1
    %p122 = por %p120, %p121
    %p124 = scmp.ne.s32.totalorder %s107, %s123
    %p125 = scmp.eq.s32.totalorder %s15, 0
    %p126 = por %p124, %p125
    %p127 = scmp.le.s32.totalorder 1, %s9
    %p128 = scmp.lt.s32.totalorder %s9, 3
    %p129 = pnand %p127, %p128
    %p130 = pneg %p129
    // Predicated region
    $region9: #{upcat_forward.1} parent=5 // pred_check
      _
    $region10: #{upcat_forward.1} parent=5 // pred_check_branch
      %132 = sbr.rel (%p129) target = $region12
    $region11: #{upcat_forward.1} parent=5 // pred_region
      %s133 = ssub.s32 %s9, 1
      // Predicated region
      $region13: #{upcat_forward.1} parent=11 // pred_check
        %p134 = pneg %p70
      $region14: #{upcat_forward.1} parent=11 // pred_check_branch
        %136 = sbr.rel (%p134) target = $region16
      $region15: #{upcat_forward.1} parent=11 // pred_region
        _
      $region16: #{upcat_forward.1} parent=11 // pred_fallthru
        _
      // Predicated region
      $region17: #{upcat_forward.1} parent=11 // pred_check
        %p137 = pneg %p91
      $region18: #{upcat_forward.1} parent=11 // pred_check_branch
        %139 = sbr.rel (%p137) target = $region20
      $region19: #{upcat_forward.1} parent=11 // pred_region
        _
      $region20: #{upcat_forward.1} parent=11 // pred_fallthru
        _
    $region12: #{upcat_forward.1} parent=5 // pred_fallthru
      _
    %p140 = scmp.lt.s32.totalorder %s9, 2
    // Predicated region
    $region21: #{upcat_forward.1} parent=5 // pred_check
      %p141 = pneg %p140
    $region22: #{upcat_forward.1} parent=5 // pred_check_branch
      %143 = sbr.rel (%p141) target = $region24
    $region23: #{upcat_forward.1} parent=5 // pred_region
      // Predicated region
      $region25: #{upcat_forward.1} parent=23 // pred_check
        %p144 = pneg %p43
      $region26: #{upcat_forward.1} parent=23 // pred_check_branch
        %146 = sbr.rel (%p144) target = $region28
      $region27: #{upcat_forward.1} parent=23 // pred_region
        %p147 = scmp.lt.s32.totalorder %s16, 1
        %s148 = scalar_select %p147, %s16, 1
        %p149 = scmp.lt.s32.totalorder %s17, 0
        %s150 = scalar_select %p149, %s17, 0
        %s151 = sadd.s32 %s150, %s148
        %s152 = smul.addr %s151, 8
        %s153 = scalar_lea.vmem %s0, %s152
      $region28: #{upcat_forward.1} parent=23 // pred_fallthru
        _
    $region24: #{upcat_forward.1} parent=5 // pred_fallthru
      _
    %p154 = scmp.le.s32.totalorder 1, %s9
    %p155 = scmp.lt.s32.totalorder %s9, 3
    %p156 = pnand %p154, %p155
    %p157 = pneg %p156
    // Predicated region
    $region29: #{upcat_forward.1} parent=5 // pred_check
      _
    $region30: #{upcat_forward.1} parent=5 // pred_check_branch
      %159 = sbr.rel (%p156) target = $region32
    $region31: #{upcat_forward.1} parent=5 // pred_region
      %s160 = ssub.s32 %s9, 1
      %p161 = scmp.lt.s32.totalorder %s18, 1
      %s162 = scalar_select %p161, %s18, 1
      %p163 = scmp.lt.s32.totalorder %s19, 0
      %s164 = scalar_select %p163, %s19, 0
      %s165 = sadd.s32 %s164, %s162
      %s166 = smul.addr %s165, 8
      %s167 = scalar_lea.vmem %s0, %s166
      %p168 = pneg %p49
      %p169 = pneg %p46
      %p170 = pneg %p70
      %p171 = pneg %p67
      %p172 = pneg %p91
      %p173 = pneg %p88
      %p174 = pneg %p119
      %p175 = pneg %p116
      %p176 = scmp.lt.s32.totalorder %s18, 1
      %s177 = scalar_select %p176, %s18, 1
      %p178 = scmp.lt.s32.totalorder %s19, 0
      %s179 = scalar_select %p178, %s19, 0
      %s180 = smul.addr %s177, 2
      %s181 = sadd.s32 %s179, %s180
      %s182 = smul.addr %s181, 8
      %s183 = scalar_lea.vmem %s3, %s182
      %p184 = scmp.lt.s32.totalorder %s18, 1
      %s185 = scalar_select %p184, %s18, 1
      %p186 = scmp.lt.s32.totalorder %s19, 0
      %s187 = scalar_select %p186, %s19, 0
      %s188 = sadd.s32 %s187, %s185
      %s189 = smul.addr %s188, 8
      %s190 = scalar_lea.vmem %s0, %s189
      %p191 = scmp.lt.s32.totalorder %s18, 1
      %s192 = scalar_select %p191, %s18, 1
      %p193 = scmp.lt.s32.totalorder %s19, 0
      %s194 = scalar_select %p193, %s19, 0
      %s195 = smul.addr %s192, 2
      %s196 = sadd.s32 %s194, %s195
      %s197 = smul.addr %s196, 8
      %s198 = scalar_lea.vmem %s3, %s197
      %v200 = vld [vmem:[%s190] sm:$0xff]
      %v201 = vpack.c.bf16 %v200, %v200
      %v202 = vld [vmem:[%s1] sm:$0xf]
      %v203 = vld [vmem:[%s1 + $0x4] sm:$0xf]
      %v204 = vld [vmem:[%s2] sm:$0xff]
      %v205 = vld [vmem:[%s2 + $0x8] sm:$0xff]
      %207 = vset.pattern.permute.xlu0 0
      %208 = vperm.xlu0 %207, %v204
      %v209 = vpop.permute.xlu0 %208
      %212 = vset.pattern.permute.xlu0 0
      %213 = vperm.xlu0 %212, %v205
      %v214 = vpop.permute.xlu0 %213
      %v218 = vunpack.c.l.b16 %v202
      %v219 = vunpack.c.l.b16 %v203
      %v220 = vpack.c.b16 %v219, %v218
      %vm221 = vcmask 64512
      %v223 = vsel %vm221, %v220, 0
      %vm225 = vcmask 1043456
      %v227 = vsel %vm225, %v201, 0
      %229 = vmatprep.subr.bf16.mxu0 0
      %230 = vmatpush1.bf16.msra.mxu0 %v227
      %231 = vmatprep.subr.bf16.mxu0 0
      %232 = vmatpush1.bf16.msra.mxu0 0
      %233 = vmatprep.subr.bf16.mxu0 0
      %234 = vmatpush1.bf16.msra.mxu0 0
      %235 = vmatprep.subr.bf16.mxu0 0
      %236 = vmatpush1.bf16.msra.mxu0 0
      %237 = vmatprep.subr.bf16.mxu0 0
      %238 = vmatpush1.bf16.msra.mxu0 0
      %239 = vmatprep.subr.bf16.mxu0 0
      %240 = vmatpush1.bf16.msra.mxu0 0
      %241 = vmatprep.subr.bf16.mxu0 0
      %242 = vmatpush1.bf16.msra.mxu0 0
      %243 = vmatprep.subr.bf16.mxu0 0
      %244 = vmatpush1.bf16.msra.mxu0 0
      %245 = vmatprep.subr.bf16.mxu0 0
      %246 = vmatpush1.bf16.msra.mxu0 0
      %247 = vmatprep.subr.bf16.mxu0 0
      %248 = vmatpush1.bf16.msra.mxu0 0
      %249 = vmatprep.subr.bf16.mxu0 0
      %250 = vmatpush1.bf16.msra.mxu0 0
      %251 = vmatprep.subr.bf16.mxu0 0
      %252 = vmatpush1.bf16.msra.mxu0 0
      %253 = vmatprep.subr.bf16.mxu0 0
      %254 = vmatpush1.bf16.msra.mxu0 0
      %255 = vmatprep.subr.bf16.mxu0 0
      %256 = vmatpush1.bf16.msra.mxu0 0
      %257 = vmatprep.subr.bf16.mxu0 0
      %258 = vmatpush1.bf16.msra.mxu0 0
      %259 = vmatprep.subr.bf16.mxu0 0
      %260 = vmatpush1.bf16.msra.mxu0 0
      %261 = vmatprep.mubr.bf16.mxu0 0
      %262 = vmatmul.mubr.bf16.gmra.mrb[0].mxu0 %v223
      %v263 = vpop.f32.mrb[0].mxu0
      %v264 = vadd.f32 %v209, %v263
      %v265 = vpop.f32.mrb[0].mxu0
      %v266 = vpop.f32.mrb[0].mxu0
      %v267 = vadd.f32 %v214, %v266
      %v268 = vpop.f32.mrb[0].mxu0
      %269 = vdwg.mxu0
      %vm270 = vcmask 523264
      %271 = vst.msk [vmem:[%s198] sm:$0xff] %vm270, %v264
      %272 = vst.msk [vmem:[%s198 + $0x8] sm:$0xff] %vm270, %v267
      %p273 = scmp.lt.s32.totalorder %s18, 1
      %s274 = scalar_select %p273, %s18, 1
      %p275 = scmp.lt.s32.totalorder %s19, 0
      %s276 = scalar_select %p275, %s19, 0
      %s277 = smul.addr %s274, 2
      %s278 = sadd.s32 %s276, %s277
      %s279 = smul.addr %s278, 8
      %s280 = scalar_lea.vmem %s3, %s279
      // Predicated region
      $region33: #{upcat_forward.1} parent=31 // pred_check
        %p281 = pneg %p116
      $region34: #{upcat_forward.1} parent=31 // pred_check_branch
        %283 = sbr.rel (%p281) target = $region36
      $region35: #{upcat_forward.1} parent=31 // pred_region
        _
      $region36: #{upcat_forward.1} parent=31 // pred_fallthru
        _
    $region32: #{upcat_forward.1} parent=5 // pred_fallthru
      _
    %p284 = scmp.le.s32.totalorder 2, %s9
    // Predicated region
    $region37: #{upcat_forward.1} parent=5 // pred_check
      %p285 = pneg %p284
    $region38: #{upcat_forward.1} parent=5 // pred_check_branch
      %287 = sbr.rel (%p285) target = $region40
    $region39: #{upcat_forward.1} parent=5 // pred_region
      %s288 = ssub.s32 %s9, 2
      // Predicated region
      $region41: #{upcat_forward.1} parent=39 // pred_check
        %p289 = pneg %p122
      $region42: #{upcat_forward.1} parent=39 // pred_check_branch
        %291 = sbr.rel (%p289) target = $region44
      $region43: #{upcat_forward.1} parent=39 // pred_region
        %p292 = scmp.lt.s32.totalorder %s20, 1
        %s293 = scalar_select %p292, %s20, 1
        %p294 = scmp.lt.s32.totalorder %s21, 0
        %s295 = scalar_select %p294, %s21, 0
        %s296 = smul.addr %s293, 2
        %s297 = sadd.s32 %s295, %s296
        %s298 = smul.addr %s297, 8
        %s299 = scalar_lea.vmem %s3, %s298
      $region44: #{upcat_forward.1} parent=39 // pred_fallthru
        _
    $region40: #{upcat_forward.1} parent=5 // pred_fallthru
      _
  $region6: #{upcat_forward.1} parent=0 // loop_footer
    %s13 = sadd.s32 1, %s9
  $region7: #{upcat_forward.1} parent=0 // loop_footer_branch
    %8 = sbr.rel target = $region3
  $region8: #{upcat_forward.1} parent=0 // loop_exit
    _

</llo_original>
